<compile_context>
chip_gen: v7x
topology: tpu7x:2x2x1
jax: 0.10.0
libtpu: 0.0.40
codegen_flags: <defaults>
</compile_context>

<pallas_src>
import math

import jax
import jax.numpy as jnp
from jax.experimental import pallas as pl
from jax.experimental.pallas import tpu as pltpu


def va_atten_kernel(x_ref, w1_ref, b1_ref, w2_ref, out_ref):
    # x_ref block: (TB, K, D1) in the streaming dtype ; out_ref block: (TB, D1) f32.
    TB, K, D1 = x_ref.shape
    D2 = w1_ref.shape[1]

    x_in = x_ref[...]                                  # (TB, K, D1), f32 or bf16
    x2 = x_in.reshape(TB * K, D1)                      # leading-dim merge (layout-trivial)

    # att_fc + tanh: one tall MXU matmul (f32 accumulation) + EUP tanh in f32.
    # Elementwise math stays f32 so the kernel also lowers on v5e (no bf16 VPU/EUP).
    h = jnp.tanh(
        jnp.dot(x2, w1_ref[...], preferred_element_type=jnp.float32)
        + b1_ref[...]
    )                                                  # (TB*K, D2) f32

    # att_h (out_features = 1) as VPU multiply + lane reduction.
    # att_h.bias omitted: a constant shift before softmax is a no-op.
    hw = h * w2_ref[...]                               # (TB*K, D2)
    score = jnp.sum(hw.reshape(TB, K, D2), axis=-1)    # (TB, K), lane-dense

    # Softmax over K (dim=-2 of the original (..., K, D1) layout), all f32.
    m = jnp.max(score, axis=-1, keepdims=True)         # (TB, 1)
    e = jnp.exp(score - m)                             # (TB, K)
    inv = pl.reciprocal(jnp.sum(e, axis=-1, keepdims=True), approx=False)
    w = e * inv                                        # (TB, K)

    # Weighted sum over K -> (TB, D1); f32 accumulation even when x is bf16.
    xf = x_in.astype(jnp.float32)
    out_ref[...] = jnp.sum(xf * w[:, :, None], axis=1).astype(out_ref.dtype)


def _round_up(n, m):
    return ((n + m - 1) // m) * m


def _padded_tile_bytes(rows, cols, itemsize):
    """VMEM footprint of a (rows, cols) tile: minor dim pads to 128 lanes,
    second-minor pads to the sublane tile (8 for 32-bit, 16 for 16-bit)."""
    sublane = 8 * (4 // itemsize)
    return _round_up(max(rows, 1), sublane) * _round_up(max(cols, 1), 128) * itemsize


def _vmem_bytes_estimate(tb, K, D1, D2, x_itemsize):
    """Conservative per-grid-step VMEM estimate for va_atten_kernel."""
    x_blk = 2 * tb * _padded_tile_bytes(K, D1, x_itemsize)       # double-buffered x tile
    f32_tmp = 4 * _padded_tile_bytes(tb * K, max(D1, D2), 4)     # xf / h / hw / x*w temporaries
    scores = 6 * _padded_tile_bytes(tb, K, 4)                    # score + softmax stats
    out_blk = 2 * _padded_tile_bytes(tb, D1, 4)                  # double-buffered out tile
    weights = 2 * (_padded_tile_bytes(D1, D2, x_itemsize)
                   + 2 * _padded_tile_bytes(1, D2, 4))           # W1 / b1 / w2
    return x_blk + f32_tmp + scores + out_blk + weights


def _choose_block_b(B, K, D1, D2, x_itemsize, vmem_budget):
    # Largest useful block: cover B, but cap the streamed x block around 8 MiB
    # of HBM bytes per grid step (diminishing returns past a few MiB).
    hbm_rows = max(8, (8 << 20) // max(1, K * D1 * x_itemsize))
    tb = max(8, min(_round_up(B, 8), _round_up(hbm_rows, 8)))
    # Shrink until the conservative VMEM estimate fits the per-generation budget.
    while tb > 8 and _vmem_bytes_estimate(tb, K, D1, D2, x_itemsize) > vmem_budget:
        tb = max(8, _round_up(tb // 2, 8))
    # Keep >= 2 grid steps when B allows so v7x can shard the batch axis across
    # its two TensorCores (and the pipeline has steps to overlap).
    if B >= 16:
        tb = min(tb, _round_up((B + 1) // 2, 8))
    return max(8, tb)


def va_atten(x, w1, b1, w2, *, block_b=None, compute_dtype=jnp.float32):
    """x: (..., K, D1). Returns (..., D1) float32.

    w1: (D1, D2) = att_fc.weight.T
    b1: (1, D2)  = att_fc.bias
    w2: (1, D2)  = att_h.weight   (att_h.bias not needed: softmax shift-invariant)

    compute_dtype: dtype used to stream x (and W1) into the kernel / MXU.
      jnp.float32 (default) keeps strict accuracy; jnp.bfloat16 halves HBM
      traffic and doubles MXU throughput on v6e/v7x -- accumulation, tanh,
      softmax and the weighted sum stay in f32 either way.
    """
    *lead, K, D1 = x.shape
    B = 1
    for d in lead:
        B *= d
    D2 = w1.shape[1]

    compute_dtype = jnp.dtype(compute_dtype)
    x_itemsize = compute_dtype.itemsize

    xf = x.reshape(B, K, D1).astype(compute_dtype)
    w1c = w1.astype(compute_dtype)
    b1c = b1.reshape(1, D2).astype(jnp.float32)
    w2c = w2.reshape(1, D2).astype(jnp.float32)

    # Per-generation VMEM budget (64 MiB/TC on v7x, 128 MiB on v5e/v6e).
    try:
        vmem_cap = int(pltpu.get_tpu_info().vmem_capacity_bytes)
    except Exception:
        vmem_cap = 64 * 1024 * 1024   # v7x-safe fallback
    vmem_budget = int(vmem_cap * 0.70)

    if block_b is None:
        block_b = _choose_block_b(B, K, D1, D2, x_itemsize, vmem_budget)
    # Never exceed (padded) B: padding rows burn real HBM bandwidth and compute.
    block_b = max(8, _round_up(min(block_b, _round_up(B, 8)), 8))

    est = _vmem_bytes_estimate(block_b, K, D1, D2, x_itemsize)
    vmem_limit = max(32 << 20, min(int(vmem_cap * 0.92), est + (8 << 20)))

    # Pad the batch axis to a multiple of the block (zero rows are harmless:
    # uniform softmax over zeros -> zero output rows, sliced off below).
    Bp = pl.cdiv(B, block_b) * block_b
    if Bp != B:
        xf = jnp.pad(xf, ((0, Bp - B), (0, 0), (0, 0)))

    # NOTE: W1/b1/w2 use constant index_maps, so they are DMA'd once and stay
    # VMEM-resident across the grid.
    # TODO(synk): for very large D1*D2 on v7x, add pipeline_mode=pl.Buffered(1)
    # to the weight BlockSpecs to drop their unused second pipeline buffer.
    out = pl.pallas_call(
        va_atten_kernel,
        out_shape=jax.ShapeDtypeStruct((Bp, D1), jnp.float32),
        grid_spec=pltpu.PrefetchScalarGridSpec(
            num_scalar_prefetch=0,
            grid=(Bp // block_b,),
            in_specs=[
                pl.BlockSpec((block_b, K, D1), lambda b: (b, 0, 0)),  # x (streamed)
                pl.BlockSpec((D1, D2), lambda b: (0, 0)),             # W1 (resident)
                pl.BlockSpec((1, D2), lambda b: (0, 0)),              # b1 (resident)
                pl.BlockSpec((1, D2), lambda b: (0, 0)),              # W2 row (resident)
            ],
            out_specs=pl.BlockSpec((block_b, D1), lambda b: (b, 0)),
        ),
        compiler_params=pltpu.CompilerParams(
            dimension_semantics=("parallel",),   # v7x: shard batch axis over its 2 TCs
            vmem_limit_bytes=int(vmem_limit),
        ),
    )(xf, w1c, b1c, w2c)

    out = out[:B]
    return out.reshape(*lead, D1) if lead else out.reshape(D1)


def va_atten_reference(x, w1, b1, w2, b2):
    """Pure-JAX reference matching the PyTorch module (keeps b2)."""
    h = jnp.tanh(x @ w1 + b1[0])
    score = h @ w2.T + b2                  # (..., K, 1)
    weight = jax.nn.softmax(score, axis=-2)
    return (x * weight).sum(-2)


if __name__ == "__main__":
    # 4-D case from the module docstring: x = BS * c * l * dim1
    BS, C, L, D1 = 2, 4, 16, 16
    D2 = 32

    key = jax.random.PRNGKey(0)
    kx, kw1, kb1, kw2, kb2 = jax.random.split(key, 5)

    x = jax.random.normal(kx, (BS, C, L, D1), dtype=jnp.float32)

    # Deterministic parameter init matching the module's __init__ schemes:
    #   att_fc.weight: xavier_uniform (gain=1); att_h.weight: uniform(-0.1, 0.1).
    xav = math.sqrt(6.0 / (D1 + D2))
    w1 = jax.random.uniform(kw1, (D1, D2), jnp.float32, -xav, xav)    # att_fc.weight.T
    bnd1 = 1.0 / math.sqrt(D1)
    b1 = jax.random.uniform(kb1, (1, D2), jnp.float32, -bnd1, bnd1)   # att_fc.bias
    w2 = jax.random.uniform(kw2, (1, D2), jnp.float32, -0.1, 0.1)     # att_h.weight
    bnd2 = 1.0 / math.sqrt(D2)
    b2 = jax.random.uniform(kb2, (1, 1), jnp.float32, -bnd2, bnd2)    # att_h.bias (no-op pre-softmax)

    ref = va_atten_reference(x, w1, b1, w2, b2)

    # Strict f32 path (matches the PyTorch module's precision).
    out = va_atten(x, w1, b1, w2)
    jax.block_until_ready(out)
    assert out.shape == (BS, C, D1), out.shape
    assert jnp.allclose(out, ref, atol=1e-5, rtol=1e-5), "f32 path mismatch vs reference"

    # bf16 streaming path (halved HBM traffic; f32 accumulation + f32 softmax),
    # checked against the f32 reference at a bf16-appropriate tolerance.
    out_bf16 = va_atten(x, w1, b1, w2, compute_dtype=jnp.bfloat16)
    jax.block_until_ready(out_bf16)
    assert out_bf16.shape == (BS, C, D1), out_bf16.shape
    assert jnp.allclose(out_bf16, ref, atol=3e-2, rtol=3e-2), "bf16 path mismatch vs reference"

    print("KERNEL_OK")
</pallas_src>

<mosaic_0001>
module attributes {stable_mosaic.version = 11 : i64} {
  func.func @va_atten_kernel(%arg0: i32, %arg1: memref<8x16x16xf32, #tpu.memory_space<vmem>>, %arg2: memref<16x32xf32, #tpu.memory_space<vmem>>, %arg3: memref<1x32xf32, #tpu.memory_space<vmem>>, %arg4: memref<1x32xf32, #tpu.memory_space<vmem>>, %arg5: memref<8x16xf32, #tpu.memory_space<vmem>>) attributes {dimension_semantics = [#tpu.dimension_semantics<parallel>], iteration_bounds = array<i64: 1>, scalar_prefetch = 0 : i64, scratch_operands = 0 : i64, tpu.core_type = #tpu.core_type<tc>, window_params = [{transform_indices = @transform_0, window_bounds = array<i64: 8, 16, 16>}, {pipeline_mode = #tpu.pipeline_mode<synchronous>, transform_indices = @transform_1, window_bounds = array<i64: 16, 32>}, {pipeline_mode = #tpu.pipeline_mode<synchronous>, transform_indices = @transform_2, window_bounds = array<i64: 1, 32>}, {pipeline_mode = #tpu.pipeline_mode<synchronous>, transform_indices = @transform_3, window_bounds = array<i64: 1, 32>}, {transform_indices = @transform_4, window_bounds = array<i64: 8, 16>}]} {
    %c0 = arith.constant 0 : index
    %c0_0 = arith.constant 0 : index
    %c0_1 = arith.constant 0 : index
    %0 = vector.load %arg1[%c0, %c0_0, %c0_1] : memref<8x16x16xf32, #tpu.memory_space<vmem>>, vector<8x16x16xf32>
    %1 = vector.shape_cast %0 : vector<8x16x16xf32> to vector<128x16xf32>
    %c0_2 = arith.constant 0 : index
    %c0_3 = arith.constant 0 : index
    %2 = vector.load %arg2[%c0_2, %c0_3] : memref<16x32xf32, #tpu.memory_space<vmem>>, vector<16x32xf32>
    %cst = arith.constant dense<0.000000e+00> : vector<128x32xf32>
    %3 = tpu.matmul %1, %2, %cst {dimension_numbers = #tpu.dot_dimension_numbers<[1], [0], [0], [1], [0, 0, 1, 1], [], []>} : vector<128x16xf32>, vector<16x32xf32>, vector<128x32xf32> -> vector<128x32xf32>
    %c0_4 = arith.constant 0 : index
    %c0_5 = arith.constant 0 : index
    %4 = vector.load %arg3[%c0_4, %c0_5] : memref<1x32xf32, #tpu.memory_space<vmem>>, vector<1x32xf32>
    %5 = vector.broadcast %4 : vector<1x32xf32> to vector<128x32xf32>
    %6 = arith.addf %3, %5 : vector<128x32xf32>
    %7 = math.tanh %6 : vector<128x32xf32>
    %c0_6 = arith.constant 0 : index
    %c0_7 = arith.constant 0 : index
    %8 = vector.load %arg4[%c0_6, %c0_7] : memref<1x32xf32, #tpu.memory_space<vmem>>, vector<1x32xf32>
    %9 = vector.broadcast %8 : vector<1x32xf32> to vector<128x32xf32>
    %10 = arith.mulf %7, %9 : vector<128x32xf32>
    %11 = vector.shape_cast %10 : vector<128x32xf32> to vector<8x16x32xf32>
    %cst_8 = arith.constant dense<0.000000e+00> : vector<8x16xf32>
    %12 = vector.multi_reduction <add>, %11, %cst_8 [2] : vector<8x16x32xf32> to vector<8x16xf32>
    %cst_9 = arith.constant dense<0xFF800000> : vector<8xf32>
    %13 = vector.multi_reduction <maximumf>, %12, %cst_9 [1] : vector<8x16xf32> to vector<8xf32>
    %14 = vector.shape_cast %13 : vector<8xf32> to vector<8x1xf32>
    %15 = vector.broadcast %14 : vector<8x1xf32> to vector<8x16xf32>
    %16 = arith.subf %12, %15 : vector<8x16xf32>
    %17 = math.exp %16 : vector<8x16xf32>
    %cst_10 = arith.constant dense<0.000000e+00> : vector<8xf32>
    %18 = vector.multi_reduction <add>, %17, %cst_10 [1] : vector<8x16xf32> to vector<8xf32>
    %19 = vector.shape_cast %18 : vector<8xf32> to vector<8x1xf32>
    %20 = tpu.reciprocal %19 : vector<8x1xf32> -> vector<8x1xf32>
    %21 = vector.broadcast %20 : vector<8x1xf32> to vector<8x16xf32>
    %22 = arith.mulf %17, %21 : vector<8x16xf32>
    %23 = vector.shape_cast %22 : vector<8x16xf32> to vector<8x16x1xf32>
    %24 = vector.broadcast %23 : vector<8x16x1xf32> to vector<8x16x16xf32>
    %25 = arith.mulf %0, %24 : vector<8x16x16xf32>
    %cst_11 = arith.constant dense<0.000000e+00> : vector<8x16xf32>
    %26 = vector.multi_reduction <add>, %25, %cst_11 [1] : vector<8x16x16xf32> to vector<8x16xf32>
    %c0_12 = arith.constant 0 : index
    %c0_13 = arith.constant 0 : index
    %27 = vector.load %arg5[%c0_12, %c0_13] : memref<8x16xf32, #tpu.memory_space<vmem>>, vector<8x16xf32>
    tpu.vector_store %arg5[%c0_12, %c0_13], %26 {strides = array<i32>} : memref<8x16xf32, #tpu.memory_space<vmem>>, vector<8x16xf32>,
    return
  }
  func.func @transform_0(%arg0: i32) -> (i32, i32, i32) {
    %c0_i32 = arith.constant 0 : i32
    %c0_i32_0 = arith.constant 0 : i32
    %c0_i32_1 = arith.constant 0 : i32
    return %arg0, %c0_i32, %c0_i32_0 : i32, i32, i32
  }
  func.func @transform_1(%arg0: i32) -> (i32, i32) {
    %c0_i32 = arith.constant 0 : i32
    %c0_i32_0 = arith.constant 0 : i32
    %c0_i32_1 = arith.constant 0 : i32
    return %c0_i32, %c0_i32_0 : i32, i32
  }
  func.func @transform_2(%arg0: i32) -> (i32, i32) {
    %c0_i32 = arith.constant 0 : i32
    %c0_i32_0 = arith.constant 0 : i32
    %c0_i32_1 = arith.constant 0 : i32
    return %c0_i32, %c0_i32_0 : i32, i32
  }
  func.func @transform_3(%arg0: i32) -> (i32, i32) {
    %c0_i32 = arith.constant 0 : i32
    %c0_i32_0 = arith.constant 0 : i32
    %c0_i32_1 = arith.constant 0 : i32
    return %c0_i32, %c0_i32_0 : i32, i32
  }
  func.func @transform_4(%arg0: i32) -> (i32, i32) {
    %c0_i32 = arith.constant 0 : i32
    %c0_i32_0 = arith.constant 0 : i32
    return %arg0, %c0_i32 : i32, i32
  }
}

</mosaic_0001>

<llo_original>
// kernel: tpu_custom_call.1
$region0: #{tpu_custom_call.1}
  #allocation0 [shape = 'u32[]', space=smem, size = 0x4, offset = 0x4, fixed_abs, tag = 'smem constant byte address 0x4 - core index']
  #allocation1 [shape = 'u32[144,128]{1,0:T(1,128)}', space=vmem, size = 0x12000, scoped, tag = 'internal scratch']
  %s0 = inlined_call_operand.hbm [shape: f32[8,16,16], index: 0, kind: input, shape index: {}]
  %s1 = inlined_call_operand.hbm [shape: f32[16,32], index: 1, kind: input, shape index: {}]
  %s2 = inlined_call_operand.vmem [shape: f32[1,32], index: 2, kind: input, shape index: {}]
  %s3 = inlined_call_operand.vmem [shape: f32[1,32], index: 3, kind: input, shape index: {}]
  %s4 = inlined_call_operand.hbm [shape: f32[8,16], index: 4, kind: output, shape index: {}]
  %s5 = sld [smem:[#allocation0]]
  $region34: #{tpu_custom_call.1} parent=0
    _
  %s7 = ssub.s32 1, %s5
  %s8 = scalar_select 0, %s7, %s5
  $region1: #{tpu_custom_call.1} parent=0
    #allocation2 [shape = 'u8[65536]{0}', space=vmem, size = 0x10000, scoped, tag = 'input window, operand 0, single buffered']
    #allocation3 [shape = 's32[1]{0}', space=sflag, size = 0x4, scoped, tag = 'scoped memory for tpu_custom_call.1']
    #allocation4 [shape = 's32[1]{0}', space=sflag, size = 0x4, scoped, tag = 'scoped memory for tpu_custom_call.1']
    #allocation5 [shape = 'u8[8192]{0}', space=vmem, size = 0x2000, scoped, tag = 'input window, operand 1, single buffered']
    #allocation6 [shape = 's32[1]{0}', space=sflag, size = 0x4, scoped, tag = 'scoped memory for tpu_custom_call.1']
    #allocation7 [shape = 'u8[4096]{0}', space=vmem, size = 0x1000, scoped, tag = 'output window, operand 0, single buffered']
    %9 = vsyncpa [#allocation3], 0
    %10 = vsyncpa [#allocation6], 0
    %11 = vsyncpa [#allocation4], 0
    // Predicated region
    $region2: #{tpu_custom_call.1} parent=1 // pred_check
      _
    $region3: #{tpu_custom_call.1} parent=1 // pred_check_branch
      %13 = sbr.rel (0) target = $region5
    $region4: #{tpu_custom_call.1} parent=1 // pred_region
      %s15 = ssub.s32 2048, 2048
      %16 = vsyncadd [#allocation3], %s15
      %s17 = sshll.u32 [#allocation2], 4
      %s18 = int_to_ptr.vmem [resolvable:$true] %s17
      %23 = dma.hbm_to_vmem [thread:$0]  %s0, 2048, %s18, [#allocation3], 128, 128, 8
    $region5: #{tpu_custom_call.1} parent=1 // pred_fallthru
      _
    // Predicated region
    $region6: #{tpu_custom_call.1} parent=1 // pred_check
      _
    $region7: #{tpu_custom_call.1} parent=1 // pred_check_branch
      %25 = sbr.rel (0) target = $region9
    $region8: #{tpu_custom_call.1} parent=1 // pred_region
      %s27 = ssub.s32 256, 256
      %28 = vsyncadd [#allocation6], %s27
      %s29 = sshll.u32 [#allocation5], 4
      %s30 = int_to_ptr.vmem [resolvable:$true] %s29
      %35 = dma.hbm_to_vmem [thread:$0]  %s1, 256, %s30, [#allocation6], 128, 128, 8
    $region9: #{tpu_custom_call.1} parent=1 // pred_fallthru
      _
    // Predicated region
    $region10: #{tpu_custom_call.1} parent=1 // pred_check
      _
    $region11: #{tpu_custom_call.1} parent=1 // pred_check_branch
      %37 = sbr.rel (0) target = $region13
    $region12: #{tpu_custom_call.1} parent=1 // pred_region
      _
    $region13: #{tpu_custom_call.1} parent=1 // pred_fallthru
      _
    // Predicated region
    $region14: #{tpu_custom_call.1} parent=1 // pred_check
      _
    $region15: #{tpu_custom_call.1} parent=1 // pred_check_branch
      %39 = sbr.rel (0) target = $region17
    $region16: #{tpu_custom_call.1} parent=1 // pred_region
      _
    $region17: #{tpu_custom_call.1} parent=1 // pred_fallthru
      _
    // Predicated region
    $region18: #{tpu_custom_call.1} parent=1 // pred_check
      _
    $region19: #{tpu_custom_call.1} parent=1 // pred_check_branch
      %41 = sbr.rel (0) target = $region21
    $region20: #{tpu_custom_call.1} parent=1 // pred_region
      %42 = dma.done [#allocation3], 2048
    $region21: #{tpu_custom_call.1} parent=1 // pred_fallthru
      _
    // Predicated region
    $region22: #{tpu_custom_call.1} parent=1 // pred_check
      _
    $region23: #{tpu_custom_call.1} parent=1 // pred_check_branch
      %44 = sbr.rel (0) target = $region25
    $region24: #{tpu_custom_call.1} parent=1 // pred_region
      %45 = dma.done [#allocation6], 256
    $region25: #{tpu_custom_call.1} parent=1 // pred_fallthru
      _
    %v46 = vld [vmem:[#allocation2] sm:$0xff]
    %v47 = vld [vmem:[#allocation2 + $0x8] sm:$0xff]
    %v48 = vld [vmem:[#allocation2 + $0x10] sm:$0xff]
    %v49 = vld [vmem:[#allocation2 + $0x18] sm:$0xff]
    %v50 = vld [vmem:[#allocation2 + $0x20] sm:$0xff]
    %v51 = vld [vmem:[#allocation2 + $0x28] sm:$0xff]
    %v52 = vld [vmem:[#allocation2 + $0x30] sm:$0xff]
    %v53 = vld [vmem:[#allocation2 + $0x38] sm:$0xff]
    %v54 = vld [vmem:[#allocation2 + $0x40] sm:$0xff]
    %v55 = vld [vmem:[#allocation2 + $0x48] sm:$0xff]
    %v56 = vld [vmem:[#allocation2 + $0x50] sm:$0xff]
    %v57 = vld [vmem:[#allocation2 + $0x58] sm:$0xff]
    %v58 = vld [vmem:[#allocation2 + $0x60] sm:$0xff]
    %v59 = vld [vmem:[#allocation2 + $0x68] sm:$0xff]
    %v60 = vld [vmem:[#allocation2 + $0x70] sm:$0xff]
    %v61 = vld [vmem:[#allocation2 + $0x78] sm:$0xff]
    %v62 = vld [vmem:[#allocation5] sm:$0xff]
    %v63 = vld [vmem:[#allocation5 + $0x8] sm:$0xff]
    %v64 = vld [vmem:[%s2] sm:$0x1]
    %v66 = vlaneseq
    %v67 = vshrl.u32 %v66, 7
    %v68 = vsub.s32 0, %v67
    %v69 = vrot.slane %v64, %v68
    %vm71 = vcmask 130048
    %v73 = vsel %vm71, %v46, 0
    %v76 = vsel %vm71, %v47, 0
    %v79 = vsel %vm71, %v48, 0
    %v82 = vsel %vm71, %v49, 0
    %v85 = vsel %vm71, %v50, 0
    %v88 = vsel %vm71, %v51, 0
    %v91 = vsel %vm71, %v52, 0
    %v94 = vsel %vm71, %v53, 0
    %v97 = vsel %vm71, %v54, 0
    %v100 = vsel %vm71, %v55, 0
    %v103 = vsel %vm71, %v56, 0
    %v106 = vsel %vm71, %v57, 0
    %v109 = vsel %vm71, %v58, 0
    %v112 = vsel %vm71, %v59, 0
    %v115 = vsel %vm71, %v60, 0
    %v118 = vsel %vm71, %v61, 0
    %120 = vmatprep.subr.mxu0 0.0
    %121 = vmatpush1.msra.mxu0 %v62
    %122 = vmatprep.subr.mxu0 0.0
    %123 = vmatpush1.msra.mxu0 %v63
    %124 = vmatprep.subr.mxu0 0.0
    %125 = vmatpush1.msra.mxu0 0.0
    %126 = vmatprep.subr.mxu0 0.0
    %127 = vmatpush1.msra.mxu0 0.0
    %128 = vmatprep.subr.mxu0 0.0
    %129 = vmatpush1.msra.mxu0 0.0
    %130 = vmatprep.subr.mxu0 0.0
    %131 = vmatpush1.msra.mxu0 0.0
    %132 = vmatprep.subr.mxu0 0.0
    %133 = vmatpush1.msra.mxu0 0.0
    %134 = vmatprep.subr.mxu0 0.0
    %135 = vmatpush1.msra.mxu0 0.0
    %136 = vmatprep.subr.mxu0 0.0
    %137 = vmatpush1.msra.mxu0 0.0
    %138 = vmatprep.subr.mxu0 0.0
    %139 = vmatpush1.msra.mxu0 0.0
    %140 = vmatprep.subr.mxu0 0.0
    %141 = vmatpush1.msra.mxu0 0.0
    %142 = vmatprep.subr.mxu0 0.0
    %143 = vmatpush1.msra.mxu0 0.0
    %144 = vmatprep.subr.mxu0 0.0
    %145 = vmatpush1.msra.mxu0 0.0
    %146 = vmatprep.subr.mxu0 0.0
    %147 = vmatpush1.msra.mxu0 0.0
    %148 = vmatprep.subr.mxu0 0.0
    %149 = vmatpush1.msra.mxu0 0.0
    %150 = vmatprep.subr.mxu0 0.0
    %151 = vmatpush1.msra.mxu0 0.0
    %152 = vmatprep.subr.mxu0 0.0
    %153 = vmatpush1.msra.mxu0 0.0
    %154 = vmatprep.subr.mxu0 0.0
    %155 = vmatpush1.msra.mxu0 0.0
    %156 = vmatprep.subr.mxu0 0.0
    %157 = vmatpush1.msra.mxu0 0.0
    %158 = vmatprep.subr.mxu0 0.0
    %159 = vmatpush1.msra.mxu0 0.0
    %160 = vmatprep.subr.mxu0 0.0
    %161 = vmatpush1.msra.mxu0 0.0
    %162 = vmatprep.subr.mxu0 0.0
    %163 = vmatpush1.msra.mxu0 0.0
    %164 = vmatprep.subr.mxu0 0.0
    %165 = vmatpush1.msra.mxu0 0.0
    %166 = vmatprep.subr.mxu0 0.0
    %167 = vmatpush1.msra.mxu0 0.0
    %168 = vmatprep.subr.mxu0 0.0
    %169 = vmatpush1.msra.mxu0 0.0
    %170 = vmatprep.subr.mxu0 0.0
    %171 = vmatpush1.msra.mxu0 0.0
    %172 = vmatprep.subr.mxu0 0.0
    %173 = vmatpush1.msra.mxu0 0.0
    %174 = vmatprep.subr.mxu0 0.0
    %175 = vmatpush1.msra.mxu0 0.0
    %176 = vmatprep.subr.mxu0 0.0
    %177 = vmatpush1.msra.mxu0 0.0
    %178 = vmatprep.subr.mxu0 0.0
    %179 = vmatpush1.msra.mxu0 0.0
    %180 = vmatprep.subr.mxu0 0.0
    %181 = vmatpush1.msra.mxu0 0.0
    %182 = vmatprep.subr.mxu0 0.0
    %183 = vmatpush1.msra.mxu0 0.0
    %184 = vmatprep.mubr.f32.mxu0 0.0
    %185 = vmatmul.mubr.f32.gmra.mrb[0].mxu0 %v73
    %v186 = vpop.f32.mrb[0].mxu0
    %v187 = vadd.f32 %v69, %v186
    %v188 = vpop.f32.mrb[0].mxu0
    %189 = vmatprep.mubr.f32.mxu0 0.0
    %190 = vmatmul.mubr.f32.gmra.mrb[0].mxu0 %v76
    %v191 = vpop.f32.mrb[0].mxu0
    %v192 = vadd.f32 %v69, %v191
    %v193 = vpop.f32.mrb[0].mxu0
    %194 = vmatprep.mubr.f32.mxu0 0.0
    %195 = vmatmul.mubr.f32.gmra.mrb[0].mxu0 %v79
    %v196 = vpop.f32.mrb[0].mxu0
    %v197 = vadd.f32 %v69, %v196
    %v198 = vpop.f32.mrb[0].mxu0
    %199 = vmatprep.mubr.f32.mxu0 0.0
    %200 = vmatmul.mubr.f32.gmra.mrb[0].mxu0 %v82
    %v201 = vpop.f32.mrb[0].mxu0
    %v202 = vadd.f32 %v69, %v201
    %v203 = vpop.f32.mrb[0].mxu0
    %204 = vmatprep.mubr.f32.mxu0 0.0
    %205 = vmatmul.mubr.f32.gmra.mrb[0].mxu0 %v85
    %v206 = vpop.f32.mrb[0].mxu0
    %v207 = vadd.f32 %v69, %v206
    %v208 = vpop.f32.mrb[0].mxu0
    %209 = vmatprep.mubr.f32.mxu0 0.0
    %210 = vmatmul.mubr.f32.gmra.mrb[0].mxu0 %v88
    %v211 = vpop.f32.mrb[0].mxu0
    %v212 = vadd.f32 %v69, %v211
    %v213 = vpop.f32.mrb[0].mxu0
    %214 = vmatprep.mubr.f32.mxu0 0.0
    %215 = vmatmul.mubr.f32.gmra.mrb[0].mxu0 %v91
    %v216 = vpop.f32.mrb[0].mxu0
    %v217 = vadd.f32 %v69, %v216
    %v218 = vpop.f32.mrb[0].mxu0
    %219 = vmatprep.mubr.f32.mxu0 0.0
    %220 = vmatmul.mubr.f32.gmra.mrb[0].mxu0 %v94
    %v221 = vpop.f32.mrb[0].mxu0
    %v222 = vadd.f32 %v69, %v221
    %v223 = vpop.f32.mrb[0].mxu0
    %224 = vmatprep.mubr.f32.mxu0 0.0
    %225 = vmatmul.mubr.f32.gmra.mrb[0].mxu0 %v97
    %v226 = vpop.f32.mrb[0].mxu0
    %v227 = vadd.f32 %v69, %v226
    %v228 = vpop.f32.mrb[0].mxu0
    %229 = vmatprep.mubr.f32.mxu0 0.0
    %230 = vmatmul.mubr.f32.gmra.mrb[0].mxu0 %v100
    %v231 = vpop.f32.mrb[0].mxu0
    %v232 = vadd.f32 %v69, %v231
    %v233 = vpop.f32.mrb[0].mxu0
    %234 = vmatprep.mubr.f32.mxu0 0.0
    %235 = vmatmul.mubr.f32.gmra.mrb[0].mxu0 %v103
    %v236 = vpop.f32.mrb[0].mxu0
    %v237 = vadd.f32 %v69, %v236
    %v238 = vpop.f32.mrb[0].mxu0
    %239 = vmatprep.mubr.f32.mxu0 0.0
    %240 = vmatmul.mubr.f32.gmra.mrb[0].mxu0 %v106
    %v241 = vpop.f32.mrb[0].mxu0
    %v242 = vadd.f32 %v69, %v241
    %v243 = vpop.f32.mrb[0].mxu0
    %244 = vmatprep.mubr.f32.mxu0 0.0
    %245 = vmatmul.mubr.f32.gmra.mrb[0].mxu0 %v109
    %v246 = vpop.f32.mrb[0].mxu0
    %v247 = vadd.f32 %v69, %v246
    %v248 = vpop.f32.mrb[0].mxu0
    %249 = vmatprep.mubr.f32.mxu0 0.0
    %250 = vmatmul.mubr.f32.gmra.mrb[0].mxu0 %v112
    %v251 = vpop.f32.mrb[0].mxu0
    %v252 = vadd.f32 %v69, %v251
    %v253 = vpop.f32.mrb[0].mxu0
    %254 = vmatprep.mubr.f32.mxu0 0.0
    %255 = vmatmul.mubr.f32.gmra.mrb[0].mxu0 %v115
    %v256 = vpop.f32.mrb[0].mxu0
    %v257 = vadd.f32 %v69, %v256
    %v258 = vpop.f32.mrb[0].mxu0
    %259 = vmatprep.mubr.f32.mxu0 0.0
    %260 = vmatmul.mubr.f32.gmra.mrb[0].mxu0 %v118
    %v261 = vpop.f32.mrb[0].mxu0
    %v262 = vadd.f32 %v69, %v261
    %v263 = vpop.f32.mrb[0].mxu0
    %264 = vdwg.mxu0
    %v265 = vtanh.pop %v187
    %v266 = vtanh.pop %v192
    %v267 = vtanh.pop %v197
    %v268 = vtanh.pop %v202
    %v269 = vtanh.pop %v207
    %v270 = vtanh.pop %v212
    %v271 = vtanh.pop %v217
    %v272 = vtanh.pop %v222
    %v273 = vtanh.pop %v227
    %v274 = vtanh.pop %v232
    %v275 = vtanh.pop %v237
    %v276 = vtanh.pop %v242
    %v277 = vtanh.pop %v247
    %v278 = vtanh.pop %v252
    %v279 = vtanh.pop %v257
    %v280 = vtanh.pop %v262
    %v281 = vld [vmem:[%s3] sm:$0x1]
    %v283 = vlaneseq
    %v284 = vshrl.u32 %v283, 7
    %v285 = vsub.s32 0, %v284
    %v286 = vrot.slane %v281, %v285
    %v288 = vmul.f32 %v265, %v286
    %v289 = vmul.f32 %v266, %v286
    %v290 = vmul.f32 %v267, %v286
    %v291 = vmul.f32 %v268, %v286
    %v292 = vmul.f32 %v269, %v286
    %v293 = vmul.f32 %v270, %v286
    %v294 = vmul.f32 %v271, %v286
    %v295 = vmul.f32 %v272, %v286
    %v296 = vmul.f32 %v273, %v286
    %v297 = vmul.f32 %v274, %v286
    %v298 = vmul.f32 %v275, %v286
    %v299 = vmul.f32 %v276, %v286
    %v300 = vmul.f32 %v277, %v286
    %v301 = vmul.f32 %v278, %v286
    %v302 = vmul.f32 %v279, %v286
    %v303 = vmul.f32 %v280, %v286
    %vm304 = vcmask 261120
    %v305 = vsel %vm304, %v288, 0.0
    %306 = vadd.xlane.f32.xlu0 %v305
    %v307 = vpop.xlane.xlu0 %306
    %v308 = vsel %vm304, %v289, 0.0
    %309 = vadd.xlane.f32.xlu0 %v308
    %v310 = vpop.xlane.xlu0 %309
    %v311 = vsel %vm304, %v290, 0.0
    %312 = vadd.xlane.f32.xlu0 %v311
    %v313 = vpop.xlane.xlu0 %312
    %v314 = vsel %vm304, %v291, 0.0
    %315 = vadd.xlane.f32.xlu0 %v314
    %v316 = vpop.xlane.xlu0 %315
    %v317 = vsel %vm304, %v292, 0.0
    %318 = vadd.xlane.f32.xlu0 %v317
    %v319 = vpop.xlane.xlu0 %318
    %v320 = vsel %vm304, %v293, 0.0
    %321 = vadd.xlane.f32.xlu0 %v320
    %v322 = vpop.xlane.xlu0 %321
    %v323 = vsel %vm304, %v294, 0.0
    %324 = vadd.xlane.f32.xlu0 %v323
    %v325 = vpop.xlane.xlu0 %324
    %v326 = vsel %vm304, %v295, 0.0
    %327 = vadd.xlane.f32.xlu0 %v326
    %v328 = vpop.xlane.xlu0 %327
    %v329 = vsel %vm304, %v296, 0.0
    %330 = vadd.xlane.f32.xlu0 %v329
    %v331 = vpop.xlane.xlu0 %330
    %v332 = vsel %vm304, %v297, 0.0
    %333 = vadd.xlane.f32.xlu0 %v332
    %v334 = vpop.xlane.xlu0 %333
    %v335 = vsel %vm304, %v298, 0.0
    %336 = vadd.xlane.f32.xlu0 %v335
    %v337 = vpop.xlane.xlu0 %336
    %v338 = vsel %vm304, %v299, 0.0
    %339 = vadd.xlane.f32.xlu0 %v338
    %v340 = vpop.xlane.xlu0 %339
    %v341 = vsel %vm304, %v300, 0.0
    %342 = vadd.xlane.f32.xlu0 %v341
    %v343 = vpop.xlane.xlu0 %342
    %v344 = vsel %vm304, %v301, 0.0
    %345 = vadd.xlane.f32.xlu0 %v344
    %v346 = vpop.xlane.xlu0 %345
    %v347 = vsel %vm304, %v302, 0.0
    %348 = vadd.xlane.f32.xlu0 %v347
    %v349 = vpop.xlane.xlu0 %348
    %v350 = vsel %vm304, %v303, 0.0
    %351 = vadd.xlane.f32.xlu0 %v350
    %v352 = vpop.xlane.xlu0 %351
    %v369 = vlaneseq
    %v370 = vand.u32 %v369, 127
    %v371 = vlaneseq
    %v372 = vshrl.u32 %v371, 7
    %v373 = vsub.s32 %v370, %v372
    %v374 = vrot.slane %v307, %v373
    %v375 = vadd.s32 %v370, 4294967288
    %v376 = vlaneseq
    %v377 = vshrl.u32 %v376, 7
    %v378 = vsub.s32 %v375, %v377
    %v379 = vrot.slane %v310, %v378
    %vm380 = vcmask 130112
    %v381 = vsel %vm380, %v379, %v374
    %v382 = vlaneseq
    %v383 = vshrl.u32 %v382, 7
    %v384 = vsub.s32 %v370, %v383
    %v385 = vrot.slane %v313, %v384
    %v386 = vlaneseq
    %v387 = vshrl.u32 %v386, 7
    %v388 = vsub.s32 %v375, %v387
    %v389 = vrot.slane %v316, %v388
    %v390 = vsel %vm380, %v389, %v385
    %v391 = vlaneseq
    %v392 = vshrl.u32 %v391, 7
    %v393 = vsub.s32 %v370, %v392
    %v394 = vrot.slane %v319, %v393
    %v395 = vlaneseq
    %v396 = vshrl.u32 %v395, 7
    %v397 = vsub.s32 %v375, %v396
    %v398 = vrot.slane %v322, %v397
    %v399 = vsel %vm380, %v398, %v394
    %v400 = vlaneseq
    %v401 = vshrl.u32 %v400, 7
    %v402 = vsub.s32 %v370, %v401
    %v403 = vrot.slane %v325, %v402
    %v404 = vlaneseq
    %v405 = vshrl.u32 %v404, 7
    %v406 = vsub.s32 %v375, %v405
    %v407 = vrot.slane %v328, %v406
    %v408 = vsel %vm380, %v407, %v403
    %v409 = vlaneseq
    %v410 = vshrl.u32 %v409, 7
    %v411 = vsub.s32 %v370, %v410
    %v412 = vrot.slane %v331, %v411
    %v413 = vlaneseq
    %v414 = vshrl.u32 %v413, 7
    %v415 = vsub.s32 %v375, %v414
    %v416 = vrot.slane %v334, %v415
    %v417 = vsel %vm380, %v416, %v412
    %v418 = vlaneseq
    %v419 = vshrl.u32 %v418, 7
    %v420 = vsub.s32 %v370, %v419
    %v421 = vrot.slane %v337, %v420
    %v422 = vlaneseq
    %v423 = vshrl.u32 %v422, 7
    %v424 = vsub.s32 %v375, %v423
    %v425 = vrot.slane %v340, %v424
    %v426 = vsel %vm380, %v425, %v421
    %v427 = vlaneseq
    %v428 = vshrl.u32 %v427, 7
    %v429 = vsub.s32 %v370, %v428
    %v430 = vrot.slane %v343, %v429
    %v431 = vlaneseq
    %v432 = vshrl.u32 %v431, 7
    %v433 = vsub.s32 %v375, %v432
    %v434 = vrot.slane %v346, %v433
    %v435 = vsel %vm380, %v434, %v430
    %v436 = vlaneseq
    %v437 = vshrl.u32 %v436, 7
    %v438 = vsub.s32 %v370, %v437
    %v439 = vrot.slane %v349, %v438
    %v440 = vlaneseq
    %v441 = vshrl.u32 %v440, 7
    %v442 = vsub.s32 %v375, %v441
    %v443 = vrot.slane %v352, %v442
    %v444 = vsel %vm380, %v443, %v439
    %vm445 = vcmask 1041409
    %v446 = vsel %vm445, %v390, %v381
    %vm447 = vcmask 1042434
    %v448 = vsel %vm447, %v399, %v446
    %vm449 = vcmask 1043459
    %v450 = vsel %vm449, %v408, %v448
    %vm451 = vcmask 1044484
    %v452 = vsel %vm451, %v417, %v450
    %vm453 = vcmask 1045509
    %v454 = vsel %vm453, %v426, %v452
    %vm455 = vcmask 1046534
    %v456 = vsel %vm455, %v435, %v454
    %vm457 = vcmask 1047559
    %v458 = vsel %vm457, %v444, %v456
    %v460 = vsel %vm71, %v458, -inf
    %461 = vmax.xlane.f32.xlu0 %v460
    %v462 = vpop.xlane.xlu0 %461
    %v464 = vlaneseq
    %v465 = vshrl.u32 %v464, 7
    %v466 = vsub.s32 0, %v465
    %v467 = vrot.slane %v462, %v466
    %v468 = vlaneseq
    %v469 = vshrl.u32 %v468, 7
    %v470 = vsub.s32 1, %v469
    %v471 = vrot.slane %v462, %v470
    %v472 = vlaneseq
    %v473 = vshrl.u32 %v472, 7
    %v474 = vsub.s32 2, %v473
    %v475 = vrot.slane %v462, %v474
    %v476 = vlaneseq
    %v477 = vshrl.u32 %v476, 7
    %v478 = vsub.s32 3, %v477
    %v479 = vrot.slane %v462, %v478
    %v480 = vlaneseq
    %v481 = vshrl.u32 %v480, 7
    %v482 = vsub.s32 4, %v481
    %v483 = vrot.slane %v462, %v482
    %v484 = vlaneseq
    %v485 = vshrl.u32 %v484, 7
    %v486 = vsub.s32 5, %v485
    %v487 = vrot.slane %v462, %v486
    %v488 = vlaneseq
    %v489 = vshrl.u32 %v488, 7
    %v490 = vsub.s32 6, %v489
    %v491 = vrot.slane %v462, %v490
    %v492 = vlaneseq
    %v493 = vshrl.u32 %v492, 7
    %v494 = vsub.s32 7, %v493
    %v495 = vrot.slane %v462, %v494
    %v504 = vsub.f32 %v307, %v467
    %v505 = vsub.f32 %v310, %v467
    %v506 = vsub.f32 %v313, %v471
    %v507 = vsub.f32 %v316, %v471
    %v508 = vsub.f32 %v319, %v475
    %v509 = vsub.f32 %v322, %v475
    %v510 = vsub.f32 %v325, %v479
    %v511 = vsub.f32 %v328, %v479
    %v512 = vsub.f32 %v331, %v483
    %v513 = vsub.f32 %v334, %v483
    %v514 = vsub.f32 %v337, %v487
    %v515 = vsub.f32 %v340, %v487
    %v516 = vsub.f32 %v343, %v491
    %v517 = vsub.f32 %v346, %v491
    %v518 = vsub.f32 %v349, %v495
    %v519 = vsub.f32 %v352, %v495
    %v520 = vmul.f32 %v504, 1.442695
    %v521 = vpow.pop %v520
    %v522 = vmul.f32 %v505, 1.442695
    %v523 = vpow.pop %v522
    %v524 = vmul.f32 %v506, 1.442695
    %v525 = vpow.pop %v524
    %v526 = vmul.f32 %v507, 1.442695
    %v527 = vpow.pop %v526
    %v528 = vmul.f32 %v508, 1.442695
    %v529 = vpow.pop %v528
    %v530 = vmul.f32 %v509, 1.442695
    %v531 = vpow.pop %v530
    %v532 = vmul.f32 %v510, 1.442695
    %v533 = vpow.pop %v532
    %v534 = vmul.f32 %v511, 1.442695
    %v535 = vpow.pop %v534
    %v536 = vmul.f32 %v512, 1.442695
    %v537 = vpow.pop %v536
    %v538 = vmul.f32 %v513, 1.442695
    %v539 = vpow.pop %v538
    %v540 = vmul.f32 %v514, 1.442695
    %v541 = vpow.pop %v540
    %v542 = vmul.f32 %v515, 1.442695
    %v543 = vpow.pop %v542
    %v544 = vmul.f32 %v516, 1.442695
    %v545 = vpow.pop %v544
    %v546 = vmul.f32 %v517, 1.442695
    %v547 = vpow.pop %v546
    %v548 = vmul.f32 %v518, 1.442695
    %v549 = vpow.pop %v548
    %v550 = vmul.f32 %v519, 1.442695
    %v551 = vpow.pop %v550
    %568 = vset.pattern.permute.xlu0 0
    %569 = vperm.xlu0 %568, %v521
    %v570 = vpop.permute.xlu0 %569
    %571 = vset.pattern.permute.xlu0 0
    %572 = vperm.xlu0 %571, %v523
    %v573 = vpop.permute.xlu0 %572
    %574 = vset.pattern.permute.xlu0 0
    %575 = vperm.xlu0 %574, %v525
    %v576 = vpop.permute.xlu0 %575
    %577 = vset.pattern.permute.xlu0 0
    %578 = vperm.xlu0 %577, %v527
    %v579 = vpop.permute.xlu0 %578
    %580 = vset.pattern.permute.xlu0 0
    %581 = vperm.xlu0 %580, %v529
    %v582 = vpop.permute.xlu0 %581
    %583 = vset.pattern.permute.xlu0 0
    %584 = vperm.xlu0 %583, %v531
    %v585 = vpop.permute.xlu0 %584
    %586 = vset.pattern.permute.xlu0 0
    %587 = vperm.xlu0 %586, %v533
    %v588 = vpop.permute.xlu0 %587
    %589 = vset.pattern.permute.xlu0 0
    %590 = vperm.xlu0 %589, %v535
    %v591 = vpop.permute.xlu0 %590
    %592 = vset.pattern.permute.xlu0 0
    %593 = vperm.xlu0 %592, %v537
    %v594 = vpop.permute.xlu0 %593
    %595 = vset.pattern.permute.xlu0 0
    %596 = vperm.xlu0 %595, %v539
    %v597 = vpop.permute.xlu0 %596
    %598 = vset.pattern.permute.xlu0 0
    %599 = vperm.xlu0 %598, %v541
    %v600 = vpop.permute.xlu0 %599
    %601 = vset.pattern.permute.xlu0 0
    %602 = vperm.xlu0 %601, %v543
    %v603 = vpop.permute.xlu0 %602
    %604 = vset.pattern.permute.xlu0 0
    %605 = vperm.xlu0 %604, %v545
    %v606 = vpop.permute.xlu0 %605
    %607 = vset.pattern.permute.xlu0 0
    %608 = vperm.xlu0 %607, %v547
    %v609 = vpop.permute.xlu0 %608
    %610 = vset.pattern.permute.xlu0 0
    %611 = vperm.xlu0 %610, %v549
    %v612 = vpop.permute.xlu0 %611
    %613 = vset.pattern.permute.xlu0 0
    %614 = vperm.xlu0 %613, %v551
    %v615 = vpop.permute.xlu0 %614
    %v616 = vlaneseq
    %v617 = vshrl.u32 %v616, 7
    %v618 = vsub.s32 %v370, %v617
    %v619 = vrot.slane %v570, %v618
    %v620 = vlaneseq
    %v621 = vshrl.u32 %v620, 7
    %v622 = vsub.s32 %v375, %v621
    %v623 = vrot.slane %v573, %v622
    %v624 = vsel %vm380, %v623, %v619
    %v625 = vlaneseq
    %v626 = vshrl.u32 %v625, 7
    %v627 = vsub.s32 %v370, %v626
    %v628 = vrot.slane %v576, %v627
    %v629 = vlaneseq
    %v630 = vshrl.u32 %v629, 7
    %v631 = vsub.s32 %v375, %v630
    %v632 = vrot.slane %v579, %v631
    %v633 = vsel %vm380, %v632, %v628
    %v634 = vlaneseq
    %v635 = vshrl.u32 %v634, 7
    %v636 = vsub.s32 %v370, %v635
    %v637 = vrot.slane %v582, %v636
    %v638 = vlaneseq
    %v639 = vshrl.u32 %v638, 7
    %v640 = vsub.s32 %v375, %v639
    %v641 = vrot.slane %v585, %v640
    %v642 = vsel %vm380, %v641, %v637
    %v643 = vlaneseq
    %v644 = vshrl.u32 %v643, 7
    %v645 = vsub.s32 %v370, %v644
    %v646 = vrot.slane %v588, %v645
    %v647 = vlaneseq
    %v648 = vshrl.u32 %v647, 7
    %v649 = vsub.s32 %v375, %v648
    %v650 = vrot.slane %v591, %v649
    %v651 = vsel %vm380, %v650, %v646
    %v652 = vlaneseq
    %v653 = vshrl.u32 %v652, 7
    %v654 = vsub.s32 %v370, %v653
    %v655 = vrot.slane %v594, %v654
    %v656 = vlaneseq
    %v657 = vshrl.u32 %v656, 7
    %v658 = vsub.s32 %v375, %v657
    %v659 = vrot.slane %v597, %v658
    %v660 = vsel %vm380, %v659, %v655
    %v661 = vlaneseq
    %v662 = vshrl.u32 %v661, 7
    %v663 = vsub.s32 %v370, %v662
    %v664 = vrot.slane %v600, %v663
    %v665 = vlaneseq
    %v666 = vshrl.u32 %v665, 7
    %v667 = vsub.s32 %v375, %v666
    %v668 = vrot.slane %v603, %v667
    %v669 = vsel %vm380, %v668, %v664
    %v670 = vlaneseq
    %v671 = vshrl.u32 %v670, 7
    %v672 = vsub.s32 %v370, %v671
    %v673 = vrot.slane %v606, %v672
    %v674 = vlaneseq
    %v675 = vshrl.u32 %v674, 7
    %v676 = vsub.s32 %v375, %v675
    %v677 = vrot.slane %v609, %v676
    %v678 = vsel %vm380, %v677, %v673
    %v679 = vlaneseq
    %v680 = vshrl.u32 %v679, 7
    %v681 = vsub.s32 %v370, %v680
    %v682 = vrot.slane %v612, %v681
    %v683 = vlaneseq
    %v684 = vshrl.u32 %v683, 7
    %v685 = vsub.s32 %v375, %v684
    %v686 = vrot.slane %v615, %v685
    %v687 = vsel %vm380, %v686, %v682
    %v688 = vsel %vm445, %v633, %v624
    %v689 = vsel %vm447, %v642, %v688
    %v690 = vsel %vm449, %v651, %v689
    %v691 = vsel %vm451, %v660, %v690
    %v692 = vsel %vm453, %v669, %v691
    %v693 = vsel %vm455, %v678, %v692
    %v694 = vsel %vm457, %v687, %v693
    %v696 = vsel %vm71, %v694, 0.0
    %697 = vadd.xlane.f32.xlu0 %v696
    %v698 = vpop.xlane.xlu0 %697
    %v699 = vrcp.pop %v698
    %v701 = vlaneseq
    %v702 = vshrl.u32 %v701, 7
    %v703 = vsub.s32 0, %v702
    %v704 = vrot.slane %v699, %v703
    %v705 = vlaneseq
    %v706 = vshrl.u32 %v705, 7
    %v707 = vsub.s32 1, %v706
    %v708 = vrot.slane %v699, %v707
    %v709 = vlaneseq
    %v710 = vshrl.u32 %v709, 7
    %v711 = vsub.s32 2, %v710
    %v712 = vrot.slane %v699, %v711
    %v713 = vlaneseq
    %v714 = vshrl.u32 %v713, 7
    %v715 = vsub.s32 3, %v714
    %v716 = vrot.slane %v699, %v715
    %v717 = vlaneseq
    %v718 = vshrl.u32 %v717, 7
    %v719 = vsub.s32 4, %v718
    %v720 = vrot.slane %v699, %v719
    %v721 = vlaneseq
    %v722 = vshrl.u32 %v721, 7
    %v723 = vsub.s32 5, %v722
    %v724 = vrot.slane %v699, %v723
    %v725 = vlaneseq
    %v726 = vshrl.u32 %v725, 7
    %v727 = vsub.s32 6, %v726
    %v728 = vrot.slane %v699, %v727
    %v729 = vlaneseq
    %v730 = vshrl.u32 %v729, 7
    %v731 = vsub.s32 7, %v730
    %v732 = vrot.slane %v699, %v731
    %v741 = vmul.f32 %v521, %v704
    %v742 = vmul.f32 %v523, %v704
    %v743 = vmul.f32 %v525, %v708
    %v744 = vmul.f32 %v527, %v708
    %v745 = vmul.f32 %v529, %v712
    %v746 = vmul.f32 %v531, %v712
    %v747 = vmul.f32 %v533, %v716
    %v748 = vmul.f32 %v535, %v716
    %v749 = vmul.f32 %v537, %v720
    %v750 = vmul.f32 %v539, %v720
    %v751 = vmul.f32 %v541, %v724
    %v752 = vmul.f32 %v543, %v724
    %v753 = vmul.f32 %v545, %v728
    %v754 = vmul.f32 %v547, %v728
    %v755 = vmul.f32 %v549, %v732
    %v756 = vmul.f32 %v551, %v732
    %758 = vset.pattern.permute.xlu0 0
    %759 = vperm.xlu0 %758, %v741
    %v760 = vpop.permute.xlu0 %759
    %763 = vset.pattern.permute.xlu0 0
    %764 = vperm.xlu0 %763, %v742
    %v765 = vpop.permute.xlu0 %764
    %768 = vset.pattern.permute.xlu0 0
    %769 = vperm.xlu0 %768, %v743
    %v770 = vpop.permute.xlu0 %769
    %773 = vset.pattern.permute.xlu0 0
    %774 = vperm.xlu0 %773, %v744
    %v775 = vpop.permute.xlu0 %774
    %778 = vset.pattern.permute.xlu0 0
    %779 = vperm.xlu0 %778, %v745
    %v780 = vpop.permute.xlu0 %779
    %783 = vset.pattern.permute.xlu0 0
    %784 = vperm.xlu0 %783, %v746
    %v785 = vpop.permute.xlu0 %784
    %788 = vset.pattern.permute.xlu0 0
    %789 = vperm.xlu0 %788, %v747
    %v790 = vpop.permute.xlu0 %789
    %793 = vset.pattern.permute.xlu0 0
    %794 = vperm.xlu0 %793, %v748
    %v795 = vpop.permute.xlu0 %794
    %798 = vset.pattern.permute.xlu0 0
    %799 = vperm.xlu0 %798, %v749
    %v800 = vpop.permute.xlu0 %799
    %803 = vset.pattern.permute.xlu0 0
    %804 = vperm.xlu0 %803, %v750
    %v805 = vpop.permute.xlu0 %804
    %808 = vset.pattern.permute.xlu0 0
    %809 = vperm.xlu0 %808, %v751
    %v810 = vpop.permute.xlu0 %809
    %813 = vset.pattern.permute.xlu0 0
    %814 = vperm.xlu0 %813, %v752
    %v815 = vpop.permute.xlu0 %814
    %818 = vset.pattern.permute.xlu0 0
    %819 = vperm.xlu0 %818, %v753
    %v820 = vpop.permute.xlu0 %819
    %823 = vset.pattern.permute.xlu0 0
    %824 = vperm.xlu0 %823, %v754
    %v825 = vpop.permute.xlu0 %824
    %828 = vset.pattern.permute.xlu0 0
    %829 = vperm.xlu0 %828, %v755
    %v830 = vpop.permute.xlu0 %829
    %833 = vset.pattern.permute.xlu0 0
    %834 = vperm.xlu0 %833, %v756
    %v835 = vpop.permute.xlu0 %834
    %v837 = vmul.f32 %v46, %v760
    %v838 = vmul.f32 %v47, %v765
    %v839 = vmul.f32 %v48, %v770
    %v840 = vmul.f32 %v49, %v775
    %v841 = vmul.f32 %v50, %v780
    %v842 = vmul.f32 %v51, %v785
    %v843 = vmul.f32 %v52, %v790
    %v844 = vmul.f32 %v53, %v795
    %v845 = vmul.f32 %v54, %v800
    %v846 = vmul.f32 %v55, %v805
    %v847 = vmul.f32 %v56, %v810
    %v848 = vmul.f32 %v57, %v815
    %v849 = vmul.f32 %v58, %v820
    %v850 = vmul.f32 %v59, %v825
    %v851 = vmul.f32 %v60, %v830
    %v852 = vmul.f32 %v61, %v835
    %v853 = vsel %vm71, %v837, 0.0
    %v854 = vsel %vm71, %v838, 0.0
    %v855 = vadd.f32 %v853, %v854
    %v856 = vrot.slane %v855, 4
    %v857 = vadd.f32 %v855, %v856
    %v858 = vrot.slane %v857, 2
    %v859 = vadd.f32 %v857, %v858
    %v860 = vrot.slane %v859, 1
    %v861 = vadd.f32 %v859, %v860
    %v862 = vsel %vm71, %v839, 0.0
    %v863 = vsel %vm71, %v840, 0.0
    %v864 = vadd.f32 %v862, %v863
    %v865 = vrot.slane %v864, 4
    %v866 = vadd.f32 %v864, %v865
    %v867 = vrot.slane %v866, 2
    %v868 = vadd.f32 %v866, %v867
    %v869 = vrot.slane %v868, 1
    %v870 = vadd.f32 %v868, %v869
    %v871 = vsel %vm71, %v841, 0.0
    %v872 = vsel %vm71, %v842, 0.0
    %v873 = vadd.f32 %v871, %v872
    %v874 = vrot.slane %v873, 4
    %v875 = vadd.f32 %v873, %v874
    %v876 = vrot.slane %v875, 2
    %v877 = vadd.f32 %v875, %v876
    %v878 = vrot.slane %v877, 1
    %v879 = vadd.f32 %v877, %v878
    %v880 = vsel %vm71, %v843, 0.0
    %v881 = vsel %vm71, %v844, 0.0
    %v882 = vadd.f32 %v880, %v881
    %v883 = vrot.slane %v882, 4
    %v884 = vadd.f32 %v882, %v883
    %v885 = vrot.slane %v884, 2
    %v886 = vadd.f32 %v884, %v885
    %v887 = vrot.slane %v886, 1
    %v888 = vadd.f32 %v886, %v887
    %v889 = vsel %vm71, %v845, 0.0
    %v890 = vsel %vm71, %v846, 0.0
    %v891 = vadd.f32 %v889, %v890
    %v892 = vrot.slane %v891, 4
    %v893 = vadd.f32 %v891, %v892
    %v894 = vrot.slane %v893, 2
    %v895 = vadd.f32 %v893, %v894
    %v896 = vrot.slane %v895, 1
    %v897 = vadd.f32 %v895, %v896
    %v898 = vsel %vm71, %v847, 0.0
    %v899 = vsel %vm71, %v848, 0.0
    %v900 = vadd.f32 %v898, %v899
    %v901 = vrot.slane %v900, 4
    %v902 = vadd.f32 %v900, %v901
    %v903 = vrot.slane %v902, 2
    %v904 = vadd.f32 %v902, %v903
    %v905 = vrot.slane %v904, 1
    %v906 = vadd.f32 %v904, %v905
    %v907 = vsel %vm71, %v849, 0.0
    %v908 = vsel %vm71, %v850, 0.0
    %v909 = vadd.f32 %v907, %v908
    %v910 = vrot.slane %v909, 4
    %v911 = vadd.f32 %v909, %v910
    %v912 = vrot.slane %v911, 2
    %v913 = vadd.f32 %v911, %v912
    %v914 = vrot.slane %v913, 1
    %v915 = vadd.f32 %v913, %v914
    %v916 = vsel %vm71, %v851, 0.0
    %v917 = vsel %vm71, %v852, 0.0
    %v918 = vadd.f32 %v916, %v917
    %v919 = vrot.slane %v918, 4
    %v920 = vadd.f32 %v918, %v919
    %v921 = vrot.slane %v920, 2
    %v922 = vadd.f32 %v920, %v921
    %v923 = vrot.slane %v922, 1
    %v924 = vadd.f32 %v922, %v923
    %v933 = vsel %vm445, %v870, %v861
    %v934 = vsel %vm447, %v879, %v933
    %v935 = vsel %vm449, %v888, %v934
    %v936 = vsel %vm451, %v897, %v935
    %v937 = vsel %vm453, %v906, %v936
    %v938 = vsel %vm455, %v915, %v937
    %v939 = vsel %vm457, %v924, %v938
    %941 = vst.msk [vmem:[#allocation7] sm:$0xff] %vm71, %v939
    // Predicated region
    $region26: #{tpu_custom_call.1} parent=1 // pred_check
      _
    $region27: #{tpu_custom_call.1} parent=1 // pred_check_branch
      %943 = sbr.rel (0) target = $region29
    $region28: #{tpu_custom_call.1} parent=1 // pred_region
      %s945 = ssub.s32 128, 128
      %946 = vsyncadd [#allocation4], %s945
      %s948 = sshll.u32 [#allocation7], 4
      %s949 = int_to_ptr.vmem [resolvable:$true] %s948
      %951 = dma.vmem_to_hbm [thread:$0]  %s949, 128, %s4, [#allocation4]
    $region29: #{tpu_custom_call.1} parent=1 // pred_fallthru
      _
    // Predicated region
    $region30: #{tpu_custom_call.1} parent=1 // pred_check
      _
    $region31: #{tpu_custom_call.1} parent=1 // pred_check_branch
      %953 = sbr.rel (0) target = $region33
    $region32: #{tpu_custom_call.1} parent=1 // pred_region
      %954 = dma.done [#allocation4], 128
    $region33: #{tpu_custom_call.1} parent=1 // pred_fallthru
      _
    %955 = vsyncpa [#allocation3], 1
    %956 = vsyncpa [#allocation6], 1
    %957 = vsyncpa [#allocation4], 1

</llo_original>
